<compile_context>
chip_gen: v7x
topology: tpu7x:2x2x1
jax: 0.10.0
libtpu: 0.0.40
codegen_flags: <defaults>
</compile_context>

<pallas_src>
import jax
import jax.numpy as jnp
from jax.experimental import pallas as pl
from jax.experimental.pallas import tpu as pltpu

H1 = 128   # hidden-1 width (nn.Linear(n_params, 128))
H2 = 128   # hidden-2 width, zero-padded up from 64 to a full 128-lane/sublane tile


def surrogate_mlp_kernel(xT_ref, w1T_ref, b1_ref, w2T_ref, b2_ref, w3_ref, b3_ref, o_ref):
    # All matmuls are NN with the batch tile on lanes -> no in-kernel transposes.
    # Layer 1: (H1, K) . (K, TM) -> (H1, TM), f32 accumulate; bias/ReLU in f32.
    h1 = jnp.dot(w1T_ref[...], xT_ref[...], preferred_element_type=jnp.float32)
    h1 = jnp.maximum(h1 + b1_ref[...], 0.0)

    # Layer 2: (H2, H1) . (H1, TM) -> (H2, TM) (H2 zero-padded 64->128), + ReLU.
    h2 = jnp.dot(w2T_ref[...], h1.astype(w2T_ref.dtype),
                 preferred_element_type=jnp.float32)
    h2 = jnp.maximum(h2 + b2_ref[...], 0.0)

    # Layer 3: (1, H2) . (H2, TM) -> (1, TM): lane-dense output row, unmasked stores.
    row = jnp.dot(w3_ref[...], h2, preferred_element_type=jnp.float32)
    o_ref[...] = (row + b3_ref[0]).astype(o_ref.dtype)


def _round_up(x, m):
    return ((x + m - 1) // m) * m


def _padded_bytes(rows, cols, itemsize):
    # VMEM footprint of a (rows, cols) tile: sublanes pad to 8, lanes pad to 128.
    return _round_up(max(rows, 1), 8) * _round_up(max(cols, 1), 128) * itemsize


def surrogate_model_forward(x, params, *, tile_m=1024, use_bf16_matmul=True,
                            min_pallas_batch=512):
    """x: [B, n_params] float32.  params: w1,b1,w2,b2,w3,b3; weights stored [in, out],
    biases [1, out] (transpose of PyTorch's [out, in] layout)."""
    w1, b1 = params["w1"], params["b1"]
    w2, b2 = params["w2"], params["b2"]
    w3, b3 = params["w3"], params["b3"]
    B, n_params = x.shape

    # Small batches: padding to >=128 rows + fixed pallas_call overhead dominates; let XLA fuse it.
    if B < min_pallas_batch:
        h1 = jnp.maximum(x @ w1 + b1, 0.0)
        h2 = jnp.maximum(h1 @ w2 + b2, 0.0)
        return h2 @ w3 + b3

    in_dtype = jnp.bfloat16 if use_bf16_matmul else jnp.float32
    itemsize = jnp.dtype(in_dtype).itemsize

    # ---- wrapper-side layout prep (batch-on-lanes / PyTorch [out, in] weight layout) ------------
    w1T = w1.T.astype(in_dtype)                                           # (H1, n_params)
    b1c = b1.reshape(H1, 1).astype(jnp.float32)                           # (H1, 1) column
    w2T = jnp.zeros((H2, H1), jnp.float32).at[: w2.shape[1], :].set(w2.T).astype(in_dtype)
    b2c = jnp.zeros((H2, 1), jnp.float32).at[: b2.shape[1], 0].set(b2[0])  # padded column
    w3r = jnp.zeros((1, H2), jnp.float32).at[:, : w3.shape[0]].set(w3.T)   # (1, H2) row, padded
    b3s = b3.reshape(1).astype(jnp.float32)                                # scalar in SMEM

    # Batch tiling: TM a multiple of 128; cap so the grid has >= 2 steps when B allows it
    # (keeps both v7x TensorCores busy via the "parallel" axis).
    tm_req = _round_up(tile_m, 128)
    tm_cap = _round_up((B + 1) // 2, 128)
    tm = max(128, min(tm_req, tm_cap))
    b_pad = _round_up(B, tm)
    num_tiles = b_pad // tm

    # x transposed so the batch tile sits on lanes: (n_params, b_pad), lane-dense blocks.
    xT = x.T.astype(in_dtype)
    if b_pad != B:
        xT = jnp.pad(xT, ((0, 0), (0, b_pad - B)))

    # VMEM budget: double-buffered xT/out tiles + resident weights/biases + f32 intermediates.
    weight_bytes = 2 * (_padded_bytes(H1, n_params, itemsize)
                        + _padded_bytes(H2, H1, itemsize)
                        + _padded_bytes(H1, 1, 4)
                        + _padded_bytes(H2, 1, 4)
                        + _padded_bytes(1, H2, 4))
    tile_bytes = 2 * _padded_bytes(n_params, tm, itemsize) + 2 * _padded_bytes(1, tm, 4)
    scratch_bytes = 2 * _padded_bytes(H1, tm, 4)   # h1T + h2T f32 intermediates
    vmem_limit = int(min(32 << 20,
                         max(8 << 20, 2 * (weight_bytes + tile_bytes + scratch_bytes))))

    cost = pl.CostEstimate(
        flops=2 * b_pad * (n_params * H1 + H1 * 64 + 64),
        transcendentals=0,
        bytes_accessed=xT.size * itemsize + b_pad * 4 + weight_bytes // 2,
    )

    out = pl.pallas_call(
        surrogate_mlp_kernel,
        out_shape=jax.ShapeDtypeStruct((1, b_pad), jnp.float32),
        grid=(num_tiles,),
        in_specs=[
            pl.BlockSpec((n_params, tm), lambda i: (0, i)),    # xT: streamed, lane-dense
            pl.BlockSpec((H1, n_params), lambda i: (0, 0)),    # w1T: VMEM-resident
            pl.BlockSpec((H1, 1), lambda i: (0, 0)),           # b1 column
            pl.BlockSpec((H2, H1), lambda i: (0, 0)),          # w2T (padded to 128 rows)
            pl.BlockSpec((H2, 1), lambda i: (0, 0)),           # b2 column (padded)
            pl.BlockSpec((1, H2), lambda i: (0, 0)),           # w3 row (padded)
            pl.BlockSpec(memory_space=pltpu.MemorySpace.SMEM), # b3 scalar in SMEM
        ],
        out_specs=pl.BlockSpec((1, tm), lambda i: (0, i)),     # lane-dense output row
        compiler_params=pltpu.CompilerParams(
            dimension_semantics=("parallel",),
            vmem_limit_bytes=vmem_limit,
        ),
        cost_estimate=cost,
    )(xT, w1T, b1c, w2T, b2c, w3r, b3s)

    # (1, b_pad) row == padded batch order; reshape back to (B, 1).
    return out.reshape(b_pad, 1)[:B]


def init_params(key, n_params):
    """Deterministic init matching PyTorch nn.Linear default U(-1/sqrt(fan_in), 1/sqrt(fan_in));
    weights stored as [in, out] (transpose of PyTorch's [out, in])."""
    dims = [(n_params, 128), (128, 64), (64, 1)]
    params = {}
    for i, (fan_in, fan_out) in enumerate(dims, start=1):
        key, kw, kb = jax.random.split(key, 3)
        bound = 1.0 / jnp.sqrt(jnp.float32(fan_in))
        params[f"w{i}"] = jax.random.uniform(
            kw, (fan_in, fan_out), jnp.float32, minval=-bound, maxval=bound)
        params[f"b{i}"] = jax.random.uniform(
            kb, (1, fan_out), jnp.float32, minval=-bound, maxval=bound)
    return params


def reference_forward(x, p):
    h1 = jnp.maximum(x @ p["w1"] + p["b1"], 0.0)
    h2 = jnp.maximum(h1 @ p["w2"] + p["b2"], 0.0)
    return h2 @ p["w3"] + p["b3"]


if __name__ == "__main__":
    n_params = 32

    key = jax.random.PRNGKey(0)
    key, k_small, k_big = jax.random.split(key, 3)
    params = init_params(key, n_params)

    # Small batch, forced through the Pallas path, exact f32 (matches reference bit-for-bit scale).
    x_small = jax.random.normal(k_small, (8, n_params), dtype=jnp.float32)
    ref_small = reference_forward(x_small, params)
    out_small = jax.block_until_ready(
        surrogate_model_forward(x_small, params, use_bf16_matmul=False, min_pallas_batch=0))
    assert out_small.shape == (8, 1), out_small.shape
    assert jnp.allclose(out_small, ref_small, atol=1e-5, rtol=1e-5), "f32 small-batch mismatch"

    # Larger batch (default Pallas path): f32-exact check and bf16-MXU fast path.
    x_big = jax.random.normal(k_big, (1024, n_params), dtype=jnp.float32)
    ref_big = reference_forward(x_big, params)

    out_big_f32 = jax.block_until_ready(
        surrogate_model_forward(x_big, params, use_bf16_matmul=False))
    assert out_big_f32.shape == (1024, 1), out_big_f32.shape
    assert jnp.allclose(out_big_f32, ref_big, atol=1e-5, rtol=1e-5), "f32 large-batch mismatch"

    out_big_bf16 = jax.block_until_ready(surrogate_model_forward(x_big, params))  # bf16 default
    err = jnp.max(jnp.abs(out_big_bf16 - ref_big))
    scale = jnp.max(jnp.abs(ref_big)) + 1e-6
    assert err / scale < 0.15, f"bf16 large-batch mismatch: rel err {float(err / scale)}"

    # Small batch through the default wrapper (XLA fallback) -- same semantics.
    out_fb = jax.block_until_ready(surrogate_model_forward(x_small, params))
    assert jnp.allclose(out_fb, ref_small, atol=1e-5, rtol=1e-5), "fallback mismatch"

    print("KERNEL_OK")
</pallas_src>

<mosaic_0001>
module attributes {stable_mosaic.version = 11 : i64} {
  func.func @surrogate_mlp_kernel(%arg0: i32, %arg1: memref<32x128xf32, #tpu.memory_space<vmem>>, %arg2: memref<128x32xf32, #tpu.memory_space<vmem>>, %arg3: memref<128x1xf32, #tpu.memory_space<vmem>>, %arg4: memref<128x128xf32, #tpu.memory_space<vmem>>, %arg5: memref<128x1xf32, #tpu.memory_space<vmem>>, %arg6: memref<1x128xf32, #tpu.memory_space<vmem>>, %arg7: memref<1xf32, #tpu.memory_space<smem>>, %arg8: memref<1x128xf32, #tpu.memory_space<vmem>>) attributes {dimension_semantics = [#tpu.dimension_semantics<parallel>], iteration_bounds = array<i64: 1>, scalar_prefetch = 0 : i64, scratch_operands = 0 : i64, tpu.core_type = #tpu.core_type<tc>, window_params = [{transform_indices = @transform_0, window_bounds = array<i64: 32, 128>}, {pipeline_mode = #tpu.pipeline_mode<synchronous>, transform_indices = @transform_1, window_bounds = array<i64: 128, 32>}, {pipeline_mode = #tpu.pipeline_mode<synchronous>, transform_indices = @transform_2, window_bounds = array<i64: 128, 1>}, {pipeline_mode = #tpu.pipeline_mode<synchronous>, transform_indices = @transform_3, window_bounds = array<i64: 128, 128>}, {pipeline_mode = #tpu.pipeline_mode<synchronous>, transform_indices = @transform_4, window_bounds = array<i64: 128, 1>}, {pipeline_mode = #tpu.pipeline_mode<synchronous>, transform_indices = @transform_5, window_bounds = array<i64: 1, 128>}, {transform_indices = @transform_6, window_bounds = array<i64: 1>}, {transform_indices = @transform_7, window_bounds = array<i64: 1, 128>}]} {
    %c0 = arith.constant 0 : index
    %c0_0 = arith.constant 0 : index
    %0 = vector.load %arg2[%c0, %c0_0] : memref<128x32xf32, #tpu.memory_space<vmem>>, vector<128x32xf32>
    %c0_1 = arith.constant 0 : index
    %c0_2 = arith.constant 0 : index
    %1 = vector.load %arg1[%c0_1, %c0_2] : memref<32x128xf32, #tpu.memory_space<vmem>>, vector<32x128xf32>
    %cst = arith.constant dense<0.000000e+00> : vector<128x128xf32>
    %2 = tpu.matmul %0, %1, %cst {dimension_numbers = #tpu.dot_dimension_numbers<[1], [0], [0], [1], [0, 0, 1, 1], [], []>} : vector<128x32xf32>, vector<32x128xf32>, vector<128x128xf32> -> vector<128x128xf32>
    %c0_3 = arith.constant 0 : index
    %c0_4 = arith.constant 0 : index
    %3 = vector.load %arg3[%c0_3, %c0_4] : memref<128x1xf32, #tpu.memory_space<vmem>>, vector<128x1xf32>
    %4 = vector.broadcast %3 : vector<128x1xf32> to vector<128x128xf32>
    %5 = arith.addf %2, %4 : vector<128x128xf32>
    %cst_5 = arith.constant 0.000000e+00 : f32
    %6 = vector.broadcast %cst_5 : f32 to vector<128x128xf32>
    %7 = arith.maximumf %5, %6 : vector<128x128xf32>
    %c0_6 = arith.constant 0 : index
    %c0_7 = arith.constant 0 : index
    %8 = vector.load %arg4[%c0_6, %c0_7] : memref<128x128xf32, #tpu.memory_space<vmem>>, vector<128x128xf32>
    %cst_8 = arith.constant dense<0.000000e+00> : vector<128x128xf32>
    %9 = tpu.matmul %8, %7, %cst_8 {dimension_numbers = #tpu.dot_dimension_numbers<[1], [0], [0], [1], [0, 0, 1, 1], [], []>} : vector<128x128xf32>, vector<128x128xf32>, vector<128x128xf32> -> vector<128x128xf32>
    %c0_9 = arith.constant 0 : index
    %c0_10 = arith.constant 0 : index
    %10 = vector.load %arg5[%c0_9, %c0_10] : memref<128x1xf32, #tpu.memory_space<vmem>>, vector<128x1xf32>
    %11 = vector.broadcast %10 : vector<128x1xf32> to vector<128x128xf32>
    %12 = arith.addf %9, %11 : vector<128x128xf32>
    %cst_11 = arith.constant 0.000000e+00 : f32
    %13 = vector.broadcast %cst_11 : f32 to vector<128x128xf32>
    %14 = arith.maximumf %12, %13 : vector<128x128xf32>
    %c0_12 = arith.constant 0 : index
    %c0_13 = arith.constant 0 : index
    %15 = vector.load %arg6[%c0_12, %c0_13] : memref<1x128xf32, #tpu.memory_space<vmem>>, vector<1x128xf32>
    %cst_14 = arith.constant dense<0.000000e+00> : vector<1x128xf32>
    %16 = tpu.matmul %15, %14, %cst_14 {dimension_numbers = #tpu.dot_dimension_numbers<[1], [0], [0], [1], [0, 0, 1, 1], [], []>} : vector<1x128xf32>, vector<128x128xf32>, vector<1x128xf32> -> vector<1x128xf32>
    %c0_15 = arith.constant 0 : index
    %17 = memref.load %arg7[%c0_15] : memref<1xf32, #tpu.memory_space<smem>>
    %18 = vector.broadcast %17 : f32 to vector<1x128xf32>
    %19 = arith.addf %16, %18 : vector<1x128xf32>
    %c0_16 = arith.constant 0 : index
    %c0_17 = arith.constant 0 : index
    %20 = vector.load %arg8[%c0_16, %c0_17] : memref<1x128xf32, #tpu.memory_space<vmem>>, vector<1x128xf32>
    tpu.vector_store %arg8[%c0_16, %c0_17], %19 {strides = array<i32>} : memref<1x128xf32, #tpu.memory_space<vmem>>, vector<1x128xf32>,
    return
  }
  func.func @transform_0(%arg0: i32) -> (i32, i32) {
    %c0_i32 = arith.constant 0 : i32
    %c0_i32_0 = arith.constant 0 : i32
    return %c0_i32, %arg0 : i32, i32
  }
  func.func @transform_1(%arg0: i32) -> (i32, i32) {
    %c0_i32 = arith.constant 0 : i32
    %c0_i32_0 = arith.constant 0 : i32
    %c0_i32_1 = arith.constant 0 : i32
    return %c0_i32, %c0_i32_0 : i32, i32
  }
  func.func @transform_2(%arg0: i32) -> (i32, i32) {
    %c0_i32 = arith.constant 0 : i32
    %c0_i32_0 = arith.constant 0 : i32
    %c0_i32_1 = arith.constant 0 : i32
    return %c0_i32, %c0_i32_0 : i32, i32
  }
  func.func @transform_3(%arg0: i32) -> (i32, i32) {
    %c0_i32 = arith.constant 0 : i32
    %c0_i32_0 = arith.constant 0 : i32
    %c0_i32_1 = arith.constant 0 : i32
    return %c0_i32, %c0_i32_0 : i32, i32
  }
  func.func @transform_4(%arg0: i32) -> (i32, i32) {
    %c0_i32 = arith.constant 0 : i32
    %c0_i32_0 = arith.constant 0 : i32
    %c0_i32_1 = arith.constant 0 : i32
    return %c0_i32, %c0_i32_0 : i32, i32
  }
  func.func @transform_5(%arg0: i32) -> (i32, i32) {
    %c0_i32 = arith.constant 0 : i32
    %c0_i32_0 = arith.constant 0 : i32
    %c0_i32_1 = arith.constant 0 : i32
    return %c0_i32, %c0_i32_0 : i32, i32
  }
  func.func @transform_6(%arg0: i32) -> i32 {
    %c0_i32 = arith.constant 0 : i32
    %c0_i32_0 = arith.constant 0 : i32
    return %c0_i32 : i32
  }
  func.func @transform_7(%arg0: i32) -> (i32, i32) {
    %c0_i32 = arith.constant 0 : i32
    %c0_i32_0 = arith.constant 0 : i32
    return %c0_i32, %arg0 : i32, i32
  }
}

</mosaic_0001>

<llo_original>
// kernel: tpu_custom_call.1
$region0: #{tpu_custom_call.1}
  #allocation0 [shape = 'u32[]', space=smem, size = 0x4, offset = 0x4, fixed_abs, tag = 'smem constant byte address 0x4 - core index']
  #allocation1 [shape = 'u32[144,128]{1,0:T(1,128)}', space=vmem, size = 0x12000, scoped, tag = 'internal scratch']
  #allocation2 [shape = 'f32[1]{0:T(128)S(6)}', space=smem, size = 0x200, scoped, tag = 'scoped memory for tpu_custom_call.1']
  %s0 = inlined_call_operand.vmem [shape: f32[32,128], index: 0, kind: input, shape index: {}]
  %s1 = inlined_call_operand.vmem [shape: f32[128,32], index: 1, kind: input, shape index: {}]
  %s2 = inlined_call_operand.vmem [shape: f32[128,1], index: 2, kind: input, shape index: {}]
  %s3 = inlined_call_operand.vmem [shape: f32[128,128], index: 3, kind: input, shape index: {}]
  %s4 = inlined_call_operand.vmem [shape: f32[128,1], index: 4, kind: input, shape index: {}]
  %s5 = inlined_call_operand.vmem [shape: f32[1,128], index: 5, kind: input, shape index: {}]
  %s6 = inlined_call_operand.<no memory space> [shape: f32[1], index: 6, kind: input, shape index: {}]
  %s7 = inlined_call_operand.hbm [shape: f32[1,128], index: 7, kind: output, shape index: {}]
  %s8 = sld [smem:[#allocation0]]
  $region38: #{tpu_custom_call.1} parent=0
    _
  %s10 = ssub.s32 1, %s8
  %s11 = scalar_select 0, %s10, %s8
  %12 = sst [smem:[#allocation2]] %s6
  $region1: #{tpu_custom_call.1} parent=0
    #allocation3 [shape = 'u8[512]{0}', space=vmem, size = 0x400, scoped, tag = 'output window, operand 0, single buffered']
    #allocation4 [shape = 's32[1]{0}', space=sflag, size = 0x4, scoped, tag = 'scoped memory for tpu_custom_call.1']
    %13 = vsyncpa [#allocation4], 0
    // Predicated region
    $region2: #{tpu_custom_call.1} parent=1 // pred_check
      _
    $region3: #{tpu_custom_call.1} parent=1 // pred_check_branch
      %15 = sbr.rel (0) target = $region5
    $region4: #{tpu_custom_call.1} parent=1 // pred_region
      _
    $region5: #{tpu_custom_call.1} parent=1 // pred_fallthru
      _
    // Predicated region
    $region6: #{tpu_custom_call.1} parent=1 // pred_check
      _
    $region7: #{tpu_custom_call.1} parent=1 // pred_check_branch
      %17 = sbr.rel (0) target = $region9
    $region8: #{tpu_custom_call.1} parent=1 // pred_region
      _
    $region9: #{tpu_custom_call.1} parent=1 // pred_fallthru
      _
    // Predicated region
    $region10: #{tpu_custom_call.1} parent=1 // pred_check
      _
    $region11: #{tpu_custom_call.1} parent=1 // pred_check_branch
      %19 = sbr.rel (0) target = $region13
    $region12: #{tpu_custom_call.1} parent=1 // pred_region
      _
    $region13: #{tpu_custom_call.1} parent=1 // pred_fallthru
      _
    // Predicated region
    $region14: #{tpu_custom_call.1} parent=1 // pred_check
      _
    $region15: #{tpu_custom_call.1} parent=1 // pred_check_branch
      %21 = sbr.rel (0) target = $region17
    $region16: #{tpu_custom_call.1} parent=1 // pred_region
      _
    $region17: #{tpu_custom_call.1} parent=1 // pred_fallthru
      _
    // Predicated region
    $region18: #{tpu_custom_call.1} parent=1 // pred_check
      _
    $region19: #{tpu_custom_call.1} parent=1 // pred_check_branch
      %23 = sbr.rel (0) target = $region21
    $region20: #{tpu_custom_call.1} parent=1 // pred_region
      _
    $region21: #{tpu_custom_call.1} parent=1 // pred_fallthru
      _
    // Predicated region
    $region22: #{tpu_custom_call.1} parent=1 // pred_check
      _
    $region23: #{tpu_custom_call.1} parent=1 // pred_check_branch
      %25 = sbr.rel (0) target = $region25
    $region24: #{tpu_custom_call.1} parent=1 // pred_region
      _
    $region25: #{tpu_custom_call.1} parent=1 // pred_fallthru
      _
    // Predicated region
    $region26: #{tpu_custom_call.1} parent=1 // pred_check
      _
    $region27: #{tpu_custom_call.1} parent=1 // pred_check_branch
      %27 = sbr.rel (0) target = $region29
    $region28: #{tpu_custom_call.1} parent=1 // pred_region
      _
    $region29: #{tpu_custom_call.1} parent=1 // pred_fallthru
      _
    %v28 = vld [vmem:[%s1] sm:$0xff]
    %v29 = vld [vmem:[%s1 + $0x8] sm:$0xff]
    %v30 = vld [vmem:[%s1 + $0x10] sm:$0xff]
    %v31 = vld [vmem:[%s1 + $0x18] sm:$0xff]
    %v32 = vld [vmem:[%s1 + $0x20] sm:$0xff]
    %v33 = vld [vmem:[%s1 + $0x28] sm:$0xff]
    %v34 = vld [vmem:[%s1 + $0x30] sm:$0xff]
    %v35 = vld [vmem:[%s1 + $0x38] sm:$0xff]
    %v36 = vld [vmem:[%s1 + $0x40] sm:$0xff]
    %v37 = vld [vmem:[%s1 + $0x48] sm:$0xff]
    %v38 = vld [vmem:[%s1 + $0x50] sm:$0xff]
    %v39 = vld [vmem:[%s1 + $0x58] sm:$0xff]
    %v40 = vld [vmem:[%s1 + $0x60] sm:$0xff]
    %v41 = vld [vmem:[%s1 + $0x68] sm:$0xff]
    %v42 = vld [vmem:[%s1 + $0x70] sm:$0xff]
    %v43 = vld [vmem:[%s1 + $0x78] sm:$0xff]
    %v44 = vld [vmem:[%s0] sm:$0xff]
    %v45 = vld [vmem:[%s0 + $0x8] sm:$0xff]
    %v46 = vld [vmem:[%s0 + $0x10] sm:$0xff]
    %v47 = vld [vmem:[%s0 + $0x18] sm:$0xff]
    %v48 = vld [vmem:[%s2] sm:$0xff]
    %v49 = vld [vmem:[%s2 + $0x8] sm:$0xff]
    %v50 = vld [vmem:[%s2 + $0x10] sm:$0xff]
    %v51 = vld [vmem:[%s2 + $0x18] sm:$0xff]
    %v52 = vld [vmem:[%s2 + $0x20] sm:$0xff]
    %v53 = vld [vmem:[%s2 + $0x28] sm:$0xff]
    %v54 = vld [vmem:[%s2 + $0x30] sm:$0xff]
    %v55 = vld [vmem:[%s2 + $0x38] sm:$0xff]
    %v56 = vld [vmem:[%s2 + $0x40] sm:$0xff]
    %v57 = vld [vmem:[%s2 + $0x48] sm:$0xff]
    %v58 = vld [vmem:[%s2 + $0x50] sm:$0xff]
    %v59 = vld [vmem:[%s2 + $0x58] sm:$0xff]
    %v60 = vld [vmem:[%s2 + $0x60] sm:$0xff]
    %v61 = vld [vmem:[%s2 + $0x68] sm:$0xff]
    %v62 = vld [vmem:[%s2 + $0x70] sm:$0xff]
    %v63 = vld [vmem:[%s2 + $0x78] sm:$0xff]
    %65 = vset.pattern.permute.xlu0 0
    %66 = vperm.xlu0 %65, %v48
    %v67 = vpop.permute.xlu0 %66
    %70 = vset.pattern.permute.xlu0 0
    %71 = vperm.xlu0 %70, %v49
    %v72 = vpop.permute.xlu0 %71
    %75 = vset.pattern.permute.xlu0 0
    %76 = vperm.xlu0 %75, %v50
    %v77 = vpop.permute.xlu0 %76
    %80 = vset.pattern.permute.xlu0 0
    %81 = vperm.xlu0 %80, %v51
    %v82 = vpop.permute.xlu0 %81
    %85 = vset.pattern.permute.xlu0 0
    %86 = vperm.xlu0 %85, %v52
    %v87 = vpop.permute.xlu0 %86
    %90 = vset.pattern.permute.xlu0 0
    %91 = vperm.xlu0 %90, %v53
    %v92 = vpop.permute.xlu0 %91
    %95 = vset.pattern.permute.xlu0 0
    %96 = vperm.xlu0 %95, %v54
    %v97 = vpop.permute.xlu0 %96
    %100 = vset.pattern.permute.xlu0 0
    %101 = vperm.xlu0 %100, %v55
    %v102 = vpop.permute.xlu0 %101
    %105 = vset.pattern.permute.xlu0 0
    %106 = vperm.xlu0 %105, %v56
    %v107 = vpop.permute.xlu0 %106
    %110 = vset.pattern.permute.xlu0 0
    %111 = vperm.xlu0 %110, %v57
    %v112 = vpop.permute.xlu0 %111
    %115 = vset.pattern.permute.xlu0 0
    %116 = vperm.xlu0 %115, %v58
    %v117 = vpop.permute.xlu0 %116
    %120 = vset.pattern.permute.xlu0 0
    %121 = vperm.xlu0 %120, %v59
    %v122 = vpop.permute.xlu0 %121
    %125 = vset.pattern.permute.xlu0 0
    %126 = vperm.xlu0 %125, %v60
    %v127 = vpop.permute.xlu0 %126
    %130 = vset.pattern.permute.xlu0 0
    %131 = vperm.xlu0 %130, %v61
    %v132 = vpop.permute.xlu0 %131
    %135 = vset.pattern.permute.xlu0 0
    %136 = vperm.xlu0 %135, %v62
    %v137 = vpop.permute.xlu0 %136
    %140 = vset.pattern.permute.xlu0 0
    %141 = vperm.xlu0 %140, %v63
    %v142 = vpop.permute.xlu0 %141
    %vm144 = vcmask 261120
    %v146 = vsel %vm144, %v28, 0
    %v149 = vsel %vm144, %v29, 0
    %v152 = vsel %vm144, %v30, 0
    %v155 = vsel %vm144, %v31, 0
    %v158 = vsel %vm144, %v32, 0
    %v161 = vsel %vm144, %v33, 0
    %v164 = vsel %vm144, %v34, 0
    %v167 = vsel %vm144, %v35, 0
    %v170 = vsel %vm144, %v36, 0
    %v173 = vsel %vm144, %v37, 0
    %v176 = vsel %vm144, %v38, 0
    %v179 = vsel %vm144, %v39, 0
    %v182 = vsel %vm144, %v40, 0
    %v185 = vsel %vm144, %v41, 0
    %v188 = vsel %vm144, %v42, 0
    %v191 = vsel %vm144, %v43, 0
    %193 = vmatprep.subr.mxu0 0.0
    %194 = vmatpush1.msra.mxu0 %v44
    %195 = vmatprep.subr.mxu0 0.0
    %196 = vmatpush1.msra.mxu0 %v45
    %197 = vmatprep.subr.mxu0 0.0
    %198 = vmatpush1.msra.mxu0 %v46
    %199 = vmatprep.subr.mxu0 0.0
    %200 = vmatpush1.msra.mxu0 %v47
    %201 = vmatprep.subr.mxu0 0.0
    %202 = vmatpush1.msra.mxu0 0.0
    %203 = vmatprep.subr.mxu0 0.0
    %204 = vmatpush1.msra.mxu0 0.0
    %205 = vmatprep.subr.mxu0 0.0
    %206 = vmatpush1.msra.mxu0 0.0
    %207 = vmatprep.subr.mxu0 0.0
    %208 = vmatpush1.msra.mxu0 0.0
    %209 = vmatprep.subr.mxu0 0.0
    %210 = vmatpush1.msra.mxu0 0.0
    %211 = vmatprep.subr.mxu0 0.0
    %212 = vmatpush1.msra.mxu0 0.0
    %213 = vmatprep.subr.mxu0 0.0
    %214 = vmatpush1.msra.mxu0 0.0
    %215 = vmatprep.subr.mxu0 0.0
    %216 = vmatpush1.msra.mxu0 0.0
    %217 = vmatprep.subr.mxu0 0.0
    %218 = vmatpush1.msra.mxu0 0.0
    %219 = vmatprep.subr.mxu0 0.0
    %220 = vmatpush1.msra.mxu0 0.0
    %221 = vmatprep.subr.mxu0 0.0
    %222 = vmatpush1.msra.mxu0 0.0
    %223 = vmatprep.subr.mxu0 0.0
    %224 = vmatpush1.msra.mxu0 0.0
    %225 = vmatprep.subr.mxu0 0.0
    %226 = vmatpush1.msra.mxu0 0.0
    %227 = vmatprep.subr.mxu0 0.0
    %228 = vmatpush1.msra.mxu0 0.0
    %229 = vmatprep.subr.mxu0 0.0
    %230 = vmatpush1.msra.mxu0 0.0
    %231 = vmatprep.subr.mxu0 0.0
    %232 = vmatpush1.msra.mxu0 0.0
    %233 = vmatprep.subr.mxu0 0.0
    %234 = vmatpush1.msra.mxu0 0.0
    %235 = vmatprep.subr.mxu0 0.0
    %236 = vmatpush1.msra.mxu0 0.0
    %237 = vmatprep.subr.mxu0 0.0
    %238 = vmatpush1.msra.mxu0 0.0
    %239 = vmatprep.subr.mxu0 0.0
    %240 = vmatpush1.msra.mxu0 0.0
    %241 = vmatprep.subr.mxu0 0.0
    %242 = vmatpush1.msra.mxu0 0.0
    %243 = vmatprep.subr.mxu0 0.0
    %244 = vmatpush1.msra.mxu0 0.0
    %245 = vmatprep.subr.mxu0 0.0
    %246 = vmatpush1.msra.mxu0 0.0
    %247 = vmatprep.subr.mxu0 0.0
    %248 = vmatpush1.msra.mxu0 0.0
    %249 = vmatprep.subr.mxu0 0.0
    %250 = vmatpush1.msra.mxu0 0.0
    %251 = vmatprep.subr.mxu0 0.0
    %252 = vmatpush1.msra.mxu0 0.0
    %253 = vmatprep.subr.mxu0 0.0
    %254 = vmatpush1.msra.mxu0 0.0
    %255 = vmatprep.subr.mxu0 0.0
    %256 = vmatpush1.msra.mxu0 0.0
    %257 = vmatprep.mubr.f32.mxu0 0.0
    %258 = vmatmul.mubr.f32.gmra.mrb[0].mxu0 %v146
    %v259 = vpop.f32.mrb[0].mxu0
    %v260 = vadd.f32 %v67, %v259
    %v261 = vpop.f32.mrb[0].mxu0
    %262 = vmatprep.mubr.f32.mxu0 0.0
    %263 = vmatmul.mubr.f32.gmra.mrb[0].mxu0 %v149
    %v264 = vpop.f32.mrb[0].mxu0
    %v265 = vadd.f32 %v72, %v264
    %v266 = vpop.f32.mrb[0].mxu0
    %267 = vmatprep.mubr.f32.mxu0 0.0
    %268 = vmatmul.mubr.f32.gmra.mrb[0].mxu0 %v152
    %v269 = vpop.f32.mrb[0].mxu0
    %v270 = vadd.f32 %v77, %v269
    %v271 = vpop.f32.mrb[0].mxu0
    %272 = vmatprep.mubr.f32.mxu0 0.0
    %273 = vmatmul.mubr.f32.gmra.mrb[0].mxu0 %v155
    %v274 = vpop.f32.mrb[0].mxu0
    %v275 = vadd.f32 %v82, %v274
    %v276 = vpop.f32.mrb[0].mxu0
    %277 = vmatprep.mubr.f32.mxu0 0.0
    %278 = vmatmul.mubr.f32.gmra.mrb[0].mxu0 %v158
    %v279 = vpop.f32.mrb[0].mxu0
    %v280 = vadd.f32 %v87, %v279
    %v281 = vpop.f32.mrb[0].mxu0
    %282 = vmatprep.mubr.f32.mxu0 0.0
    %283 = vmatmul.mubr.f32.gmra.mrb[0].mxu0 %v161
    %v284 = vpop.f32.mrb[0].mxu0
    %v285 = vadd.f32 %v92, %v284
    %v286 = vpop.f32.mrb[0].mxu0
    %287 = vmatprep.mubr.f32.mxu0 0.0
    %288 = vmatmul.mubr.f32.gmra.mrb[0].mxu0 %v164
    %v289 = vpop.f32.mrb[0].mxu0
    %v290 = vadd.f32 %v97, %v289
    %v291 = vpop.f32.mrb[0].mxu0
    %292 = vmatprep.mubr.f32.mxu0 0.0
    %293 = vmatmul.mubr.f32.gmra.mrb[0].mxu0 %v167
    %v294 = vpop.f32.mrb[0].mxu0
    %v295 = vadd.f32 %v102, %v294
    %v296 = vpop.f32.mrb[0].mxu0
    %297 = vmatprep.mubr.f32.mxu0 0.0
    %298 = vmatmul.mubr.f32.gmra.mrb[0].mxu0 %v170
    %v299 = vpop.f32.mrb[0].mxu0
    %v300 = vadd.f32 %v107, %v299
    %v301 = vpop.f32.mrb[0].mxu0
    %302 = vmatprep.mubr.f32.mxu0 0.0
    %303 = vmatmul.mubr.f32.gmra.mrb[0].mxu0 %v173
    %v304 = vpop.f32.mrb[0].mxu0
    %v305 = vadd.f32 %v112, %v304
    %v306 = vpop.f32.mrb[0].mxu0
    %307 = vmatprep.mubr.f32.mxu0 0.0
    %308 = vmatmul.mubr.f32.gmra.mrb[0].mxu0 %v176
    %v309 = vpop.f32.mrb[0].mxu0
    %v310 = vadd.f32 %v117, %v309
    %v311 = vpop.f32.mrb[0].mxu0
    %312 = vmatprep.mubr.f32.mxu0 0.0
    %313 = vmatmul.mubr.f32.gmra.mrb[0].mxu0 %v179
    %v314 = vpop.f32.mrb[0].mxu0
    %v315 = vadd.f32 %v122, %v314
    %v316 = vpop.f32.mrb[0].mxu0
    %317 = vmatprep.mubr.f32.mxu0 0.0
    %318 = vmatmul.mubr.f32.gmra.mrb[0].mxu0 %v182
    %v319 = vpop.f32.mrb[0].mxu0
    %v320 = vadd.f32 %v127, %v319
    %v321 = vpop.f32.mrb[0].mxu0
    %322 = vmatprep.mubr.f32.mxu0 0.0
    %323 = vmatmul.mubr.f32.gmra.mrb[0].mxu0 %v185
    %v324 = vpop.f32.mrb[0].mxu0
    %v325 = vadd.f32 %v132, %v324
    %v326 = vpop.f32.mrb[0].mxu0
    %327 = vmatprep.mubr.f32.mxu0 0.0
    %328 = vmatmul.mubr.f32.gmra.mrb[0].mxu0 %v188
    %v329 = vpop.f32.mrb[0].mxu0
    %v330 = vadd.f32 %v137, %v329
    %v331 = vpop.f32.mrb[0].mxu0
    %332 = vmatprep.mubr.f32.mxu0 0.0
    %333 = vmatmul.mubr.f32.gmra.mrb[0].mxu0 %v191
    %v334 = vpop.f32.mrb[0].mxu0
    %v335 = vadd.f32 %v142, %v334
    %v336 = vpop.f32.mrb[0].mxu0
    %337 = vdwg.mxu0
    %v338 = vmax.f32 %v260, 0.0
    %v339 = vmax.f32 %v265, 0.0
    %v340 = vmax.f32 %v270, 0.0
    %v341 = vmax.f32 %v275, 0.0
    %v342 = vmax.f32 %v280, 0.0
    %v343 = vmax.f32 %v285, 0.0
    %v344 = vmax.f32 %v290, 0.0
    %v345 = vmax.f32 %v295, 0.0
    %v346 = vmax.f32 %v300, 0.0
    %v347 = vmax.f32 %v305, 0.0
    %v348 = vmax.f32 %v310, 0.0
    %v349 = vmax.f32 %v315, 0.0
    %v350 = vmax.f32 %v320, 0.0
    %v351 = vmax.f32 %v325, 0.0
    %v352 = vmax.f32 %v330, 0.0
    %v353 = vmax.f32 %v335, 0.0
    %v354 = vld [vmem:[%s3] sm:$0xff]
    %v355 = vld [vmem:[%s3 + $0x8] sm:$0xff]
    %v356 = vld [vmem:[%s3 + $0x10] sm:$0xff]
    %v357 = vld [vmem:[%s3 + $0x18] sm:$0xff]
    %v358 = vld [vmem:[%s3 + $0x20] sm:$0xff]
    %v359 = vld [vmem:[%s3 + $0x28] sm:$0xff]
    %v360 = vld [vmem:[%s3 + $0x30] sm:$0xff]
    %v361 = vld [vmem:[%s3 + $0x38] sm:$0xff]
    %v362 = vld [vmem:[%s3 + $0x40] sm:$0xff]
    %v363 = vld [vmem:[%s3 + $0x48] sm:$0xff]
    %v364 = vld [vmem:[%s3 + $0x50] sm:$0xff]
    %v365 = vld [vmem:[%s3 + $0x58] sm:$0xff]
    %v366 = vld [vmem:[%s3 + $0x60] sm:$0xff]
    %v367 = vld [vmem:[%s3 + $0x68] sm:$0xff]
    %v368 = vld [vmem:[%s3 + $0x70] sm:$0xff]
    %v369 = vld [vmem:[%s3 + $0x78] sm:$0xff]
    %v370 = vld [vmem:[%s4] sm:$0xff]
    %v371 = vld [vmem:[%s4 + $0x8] sm:$0xff]
    %v372 = vld [vmem:[%s4 + $0x10] sm:$0xff]
    %v373 = vld [vmem:[%s4 + $0x18] sm:$0xff]
    %v374 = vld [vmem:[%s4 + $0x20] sm:$0xff]
    %v375 = vld [vmem:[%s4 + $0x28] sm:$0xff]
    %v376 = vld [vmem:[%s4 + $0x30] sm:$0xff]
    %v377 = vld [vmem:[%s4 + $0x38] sm:$0xff]
    %v378 = vld [vmem:[%s4 + $0x40] sm:$0xff]
    %v379 = vld [vmem:[%s4 + $0x48] sm:$0xff]
    %v380 = vld [vmem:[%s4 + $0x50] sm:$0xff]
    %v381 = vld [vmem:[%s4 + $0x58] sm:$0xff]
    %v382 = vld [vmem:[%s4 + $0x60] sm:$0xff]
    %v383 = vld [vmem:[%s4 + $0x68] sm:$0xff]
    %v384 = vld [vmem:[%s4 + $0x70] sm:$0xff]
    %v385 = vld [vmem:[%s4 + $0x78] sm:$0xff]
    %387 = vset.pattern.permute.xlu0 0
    %388 = vperm.xlu0 %387, %v370
    %v389 = vpop.permute.xlu0 %388
    %392 = vset.pattern.permute.xlu0 0
    %393 = vperm.xlu0 %392, %v371
    %v394 = vpop.permute.xlu0 %393
    %397 = vset.pattern.permute.xlu0 0
    %398 = vperm.xlu0 %397, %v372
    %v399 = vpop.permute.xlu0 %398
    %402 = vset.pattern.permute.xlu0 0
    %403 = vperm.xlu0 %402, %v373
    %v404 = vpop.permute.xlu0 %403
    %407 = vset.pattern.permute.xlu0 0
    %408 = vperm.xlu0 %407, %v374
    %v409 = vpop.permute.xlu0 %408
    %412 = vset.pattern.permute.xlu0 0
    %413 = vperm.xlu0 %412, %v375
    %v414 = vpop.permute.xlu0 %413
    %417 = vset.pattern.permute.xlu0 0
    %418 = vperm.xlu0 %417, %v376
    %v419 = vpop.permute.xlu0 %418
    %422 = vset.pattern.permute.xlu0 0
    %423 = vperm.xlu0 %422, %v377
    %v424 = vpop.permute.xlu0 %423
    %427 = vset.pattern.permute.xlu0 0
    %428 = vperm.xlu0 %427, %v378
    %v429 = vpop.permute.xlu0 %428
    %432 = vset.pattern.permute.xlu0 0
    %433 = vperm.xlu0 %432, %v379
    %v434 = vpop.permute.xlu0 %433
    %437 = vset.pattern.permute.xlu0 0
    %438 = vperm.xlu0 %437, %v380
    %v439 = vpop.permute.xlu0 %438
    %442 = vset.pattern.permute.xlu0 0
    %443 = vperm.xlu0 %442, %v381
    %v444 = vpop.permute.xlu0 %443
    %447 = vset.pattern.permute.xlu0 0
    %448 = vperm.xlu0 %447, %v382
    %v449 = vpop.permute.xlu0 %448
    %452 = vset.pattern.permute.xlu0 0
    %453 = vperm.xlu0 %452, %v383
    %v454 = vpop.permute.xlu0 %453
    %457 = vset.pattern.permute.xlu0 0
    %458 = vperm.xlu0 %457, %v384
    %v459 = vpop.permute.xlu0 %458
    %462 = vset.pattern.permute.xlu0 0
    %463 = vperm.xlu0 %462, %v385
    %v464 = vpop.permute.xlu0 %463
    %466 = vmatprep.subr.mxu0 0.0
    %467 = vmatpush1.msra.mxu0 %v338
    %468 = vmatprep.subr.mxu0 0.0
    %469 = vmatpush1.msra.mxu0 %v339
    %470 = vmatprep.subr.mxu0 0.0
    %471 = vmatpush1.msra.mxu0 %v340
    %472 = vmatprep.subr.mxu0 0.0
    %473 = vmatpush1.msra.mxu0 %v341
    %474 = vmatprep.subr.mxu0 0.0
    %475 = vmatpush1.msra.mxu0 %v342
    %476 = vmatprep.subr.mxu0 0.0
    %477 = vmatpush1.msra.mxu0 %v343
    %478 = vmatprep.subr.mxu0 0.0
    %479 = vmatpush1.msra.mxu0 %v344
    %480 = vmatprep.subr.mxu0 0.0
    %481 = vmatpush1.msra.mxu0 %v345
    %482 = vmatprep.subr.mxu0 0.0
    %483 = vmatpush1.msra.mxu0 %v346
    %484 = vmatprep.subr.mxu0 0.0
    %485 = vmatpush1.msra.mxu0 %v347
    %486 = vmatprep.subr.mxu0 0.0
    %487 = vmatpush1.msra.mxu0 %v348
    %488 = vmatprep.subr.mxu0 0.0
    %489 = vmatpush1.msra.mxu0 %v349
    %490 = vmatprep.subr.mxu0 0.0
    %491 = vmatpush1.msra.mxu0 %v350
    %492 = vmatprep.subr.mxu0 0.0
    %493 = vmatpush1.msra.mxu0 %v351
    %494 = vmatprep.subr.mxu0 0.0
    %495 = vmatpush1.msra.mxu0 %v352
    %496 = vmatprep.subr.mxu0 0.0
    %497 = vmatpush1.msra.mxu0 %v353
    %498 = vmatprep.subr.mxu0 0.0
    %499 = vmatpush1.msra.mxu0 0.0
    %500 = vmatprep.subr.mxu0 0.0
    %501 = vmatpush1.msra.mxu0 0.0
    %502 = vmatprep.subr.mxu0 0.0
    %503 = vmatpush1.msra.mxu0 0.0
    %504 = vmatprep.subr.mxu0 0.0
    %505 = vmatpush1.msra.mxu0 0.0
    %506 = vmatprep.subr.mxu0 0.0
    %507 = vmatpush1.msra.mxu0 0.0
    %508 = vmatprep.subr.mxu0 0.0
    %509 = vmatpush1.msra.mxu0 0.0
    %510 = vmatprep.subr.mxu0 0.0
    %511 = vmatpush1.msra.mxu0 0.0
    %512 = vmatprep.subr.mxu0 0.0
    %513 = vmatpush1.msra.mxu0 0.0
    %514 = vmatprep.subr.mxu0 0.0
    %515 = vmatpush1.msra.mxu0 0.0
    %516 = vmatprep.subr.mxu0 0.0
    %517 = vmatpush1.msra.mxu0 0.0
    %518 = vmatprep.subr.mxu0 0.0
    %519 = vmatpush1.msra.mxu0 0.0
    %520 = vmatprep.subr.mxu0 0.0
    %521 = vmatpush1.msra.mxu0 0.0
    %522 = vmatprep.subr.mxu0 0.0
    %523 = vmatpush1.msra.mxu0 0.0
    %524 = vmatprep.subr.mxu0 0.0
    %525 = vmatpush1.msra.mxu0 0.0
    %526 = vmatprep.subr.mxu0 0.0
    %527 = vmatpush1.msra.mxu0 0.0
    %528 = vmatprep.subr.mxu0 0.0
    %529 = vmatpush1.msra.mxu0 0.0
    %530 = vmatprep.mubr.f32.mxu0 0.0
    %531 = vmatmul.mubr.f32.gmra.mrb[0].mxu0 %v354
    %v532 = vpop.f32.mrb[0].mxu0
    %v533 = vadd.f32 %v389, %v532
    %v534 = vpop.f32.mrb[0].mxu0
    %535 = vmatprep.mubr.f32.mxu0 0.0
    %536 = vmatmul.mubr.f32.gmra.mrb[0].mxu0 %v355
    %v537 = vpop.f32.mrb[0].mxu0
    %v538 = vadd.f32 %v394, %v537
    %v539 = vpop.f32.mrb[0].mxu0
    %540 = vmatprep.mubr.f32.mxu0 0.0
    %541 = vmatmul.mubr.f32.gmra.mrb[0].mxu0 %v356
    %v542 = vpop.f32.mrb[0].mxu0
    %v543 = vadd.f32 %v399, %v542
    %v544 = vpop.f32.mrb[0].mxu0
    %545 = vmatprep.mubr.f32.mxu0 0.0
    %546 = vmatmul.mubr.f32.gmra.mrb[0].mxu0 %v357
    %v547 = vpop.f32.mrb[0].mxu0
    %v548 = vadd.f32 %v404, %v547
    %v549 = vpop.f32.mrb[0].mxu0
    %550 = vmatprep.mubr.f32.mxu0 0.0
    %551 = vmatmul.mubr.f32.gmra.mrb[0].mxu0 %v358
    %v552 = vpop.f32.mrb[0].mxu0
    %v553 = vadd.f32 %v409, %v552
    %v554 = vpop.f32.mrb[0].mxu0
    %555 = vmatprep.mubr.f32.mxu0 0.0
    %556 = vmatmul.mubr.f32.gmra.mrb[0].mxu0 %v359
    %v557 = vpop.f32.mrb[0].mxu0
    %v558 = vadd.f32 %v414, %v557
    %v559 = vpop.f32.mrb[0].mxu0
    %560 = vmatprep.mubr.f32.mxu0 0.0
    %561 = vmatmul.mubr.f32.gmra.mrb[0].mxu0 %v360
    %v562 = vpop.f32.mrb[0].mxu0
    %v563 = vadd.f32 %v419, %v562
    %v564 = vpop.f32.mrb[0].mxu0
    %565 = vmatprep.mubr.f32.mxu0 0.0
    %566 = vmatmul.mubr.f32.gmra.mrb[0].mxu0 %v361
    %v567 = vpop.f32.mrb[0].mxu0
    %v568 = vadd.f32 %v424, %v567
    %v569 = vpop.f32.mrb[0].mxu0
    %570 = vmatprep.mubr.f32.mxu0 0.0
    %571 = vmatmul.mubr.f32.gmra.mrb[0].mxu0 %v362
    %v572 = vpop.f32.mrb[0].mxu0
    %v573 = vadd.f32 %v429, %v572
    %v574 = vpop.f32.mrb[0].mxu0
    %575 = vmatprep.mubr.f32.mxu0 0.0
    %576 = vmatmul.mubr.f32.gmra.mrb[0].mxu0 %v363
    %v577 = vpop.f32.mrb[0].mxu0
    %v578 = vadd.f32 %v434, %v577
    %v579 = vpop.f32.mrb[0].mxu0
    %580 = vmatprep.mubr.f32.mxu0 0.0
    %581 = vmatmul.mubr.f32.gmra.mrb[0].mxu0 %v364
    %v582 = vpop.f32.mrb[0].mxu0
    %v583 = vadd.f32 %v439, %v582
    %v584 = vpop.f32.mrb[0].mxu0
    %585 = vmatprep.mubr.f32.mxu0 0.0
    %586 = vmatmul.mubr.f32.gmra.mrb[0].mxu0 %v365
    %v587 = vpop.f32.mrb[0].mxu0
    %v588 = vadd.f32 %v444, %v587
    %v589 = vpop.f32.mrb[0].mxu0
    %590 = vmatprep.mubr.f32.mxu0 0.0
    %591 = vmatmul.mubr.f32.gmra.mrb[0].mxu0 %v366
    %v592 = vpop.f32.mrb[0].mxu0
    %v593 = vadd.f32 %v449, %v592
    %v594 = vpop.f32.mrb[0].mxu0
    %595 = vmatprep.mubr.f32.mxu0 0.0
    %596 = vmatmul.mubr.f32.gmra.mrb[0].mxu0 %v367
    %v597 = vpop.f32.mrb[0].mxu0
    %v598 = vadd.f32 %v454, %v597
    %v599 = vpop.f32.mrb[0].mxu0
    %600 = vmatprep.mubr.f32.mxu0 0.0
    %601 = vmatmul.mubr.f32.gmra.mrb[0].mxu0 %v368
    %v602 = vpop.f32.mrb[0].mxu0
    %v603 = vadd.f32 %v459, %v602
    %v604 = vpop.f32.mrb[0].mxu0
    %605 = vmatprep.mubr.f32.mxu0 0.0
    %606 = vmatmul.mubr.f32.gmra.mrb[0].mxu0 %v369
    %v607 = vpop.f32.mrb[0].mxu0
    %v608 = vadd.f32 %v464, %v607
    %v609 = vpop.f32.mrb[0].mxu0
    %610 = vdwg.mxu0
    %v611 = vmax.f32 %v533, 0.0
    %v612 = vmax.f32 %v538, 0.0
    %v613 = vmax.f32 %v543, 0.0
    %v614 = vmax.f32 %v548, 0.0
    %v615 = vmax.f32 %v553, 0.0
    %v616 = vmax.f32 %v558, 0.0
    %v617 = vmax.f32 %v563, 0.0
    %v618 = vmax.f32 %v568, 0.0
    %v619 = vmax.f32 %v573, 0.0
    %v620 = vmax.f32 %v578, 0.0
    %v621 = vmax.f32 %v583, 0.0
    %v622 = vmax.f32 %v588, 0.0
    %v623 = vmax.f32 %v593, 0.0
    %v624 = vmax.f32 %v598, 0.0
    %v625 = vmax.f32 %v603, 0.0
    %v626 = vmax.f32 %v608, 0.0
    %v627 = vld [vmem:[%s5] sm:$0x1]
    %s628 = sld [smem:[#allocation2]]
    %v629 = vstv %s628
    %630 = vmatprep.subr.mxu0 0.0
    %631 = vmatpush1.msra.mxu0 %v611
    %632 = vmatprep.subr.mxu0 0.0
    %633 = vmatpush1.msra.mxu0 %v612
    %634 = vmatprep.subr.mxu0 0.0
    %635 = vmatpush1.msra.mxu0 %v613
    %636 = vmatprep.subr.mxu0 0.0
    %637 = vmatpush1.msra.mxu0 %v614
    %638 = vmatprep.subr.mxu0 0.0
    %639 = vmatpush1.msra.mxu0 %v615
    %640 = vmatprep.subr.mxu0 0.0
    %641 = vmatpush1.msra.mxu0 %v616
    %642 = vmatprep.subr.mxu0 0.0
    %643 = vmatpush1.msra.mxu0 %v617
    %644 = vmatprep.subr.mxu0 0.0
    %645 = vmatpush1.msra.mxu0 %v618
    %646 = vmatprep.subr.mxu0 0.0
    %647 = vmatpush1.msra.mxu0 %v619
    %648 = vmatprep.subr.mxu0 0.0
    %649 = vmatpush1.msra.mxu0 %v620
    %650 = vmatprep.subr.mxu0 0.0
    %651 = vmatpush1.msra.mxu0 %v621
    %652 = vmatprep.subr.mxu0 0.0
    %653 = vmatpush1.msra.mxu0 %v622
    %654 = vmatprep.subr.mxu0 0.0
    %655 = vmatpush1.msra.mxu0 %v623
    %656 = vmatprep.subr.mxu0 0.0
    %657 = vmatpush1.msra.mxu0 %v624
    %658 = vmatprep.subr.mxu0 0.0
    %659 = vmatpush1.msra.mxu0 %v625
    %660 = vmatprep.subr.mxu0 0.0
    %661 = vmatpush1.msra.mxu0 %v626
    %662 = vmatprep.subr.mxu0 0.0
    %663 = vmatpush1.msra.mxu0 0.0
    %664 = vmatprep.subr.mxu0 0.0
    %665 = vmatpush1.msra.mxu0 0.0
    %666 = vmatprep.subr.mxu0 0.0
    %667 = vmatpush1.msra.mxu0 0.0
    %668 = vmatprep.subr.mxu0 0.0
    %669 = vmatpush1.msra.mxu0 0.0
    %670 = vmatprep.subr.mxu0 0.0
    %671 = vmatpush1.msra.mxu0 0.0
    %672 = vmatprep.subr.mxu0 0.0
    %673 = vmatpush1.msra.mxu0 0.0
    %674 = vmatprep.subr.mxu0 0.0
    %675 = vmatpush1.msra.mxu0 0.0
    %676 = vmatprep.subr.mxu0 0.0
    %677 = vmatpush1.msra.mxu0 0.0
    %678 = vmatprep.subr.mxu0 0.0
    %679 = vmatpush1.msra.mxu0 0.0
    %680 = vmatprep.subr.mxu0 0.0
    %681 = vmatpush1.msra.mxu0 0.0
    %682 = vmatprep.subr.mxu0 0.0
    %683 = vmatpush1.msra.mxu0 0.0
    %684 = vmatprep.subr.mxu0 0.0
    %685 = vmatpush1.msra.mxu0 0.0
    %686 = vmatprep.subr.mxu0 0.0
    %687 = vmatpush1.msra.mxu0 0.0
    %688 = vmatprep.subr.mxu0 0.0
    %689 = vmatpush1.msra.mxu0 0.0
    %690 = vmatprep.subr.mxu0 0.0
    %691 = vmatpush1.msra.mxu0 0.0
    %692 = vmatprep.subr.mxu0 0.0
    %693 = vmatpush1.msra.mxu0 0.0
    %694 = vmatprep.mubr.f32.mxu0 0.0
    %695 = vmatmul.mubr.f32.gmra.mrb[0].mxu0 %v627
    %v696 = vpop.f32.mrb[0].mxu0
    %v697 = vadd.f32 %v629, %v696
    %v698 = vpop.f32.mrb[0].mxu0
    %699 = vdwg.mxu0
    %700 = vst [vmem:[#allocation3] sm:$0x1] %v697
    // Predicated region
    $region30: #{tpu_custom_call.1} parent=1 // pred_check
      _
    $region31: #{tpu_custom_call.1} parent=1 // pred_check_branch
      %702 = sbr.rel (0) target = $region33
    $region32: #{tpu_custom_call.1} parent=1 // pred_region
      %s704 = ssub.s32 16, 16
      %705 = vsyncadd [#allocation4], %s704
      %s707 = sshll.u32 [#allocation3], 4
      %s708 = int_to_ptr.vmem [resolvable:$true] %s707
      %710 = dma.vmem_to_hbm [thread:$0]  %s708, 16, %s7, [#allocation4]
    $region33: #{tpu_custom_call.1} parent=1 // pred_fallthru
      _
    // Predicated region
    $region34: #{tpu_custom_call.1} parent=1 // pred_check
      _
    $region35: #{tpu_custom_call.1} parent=1 // pred_check_branch
      %712 = sbr.rel (0) target = $region37
    $region36: #{tpu_custom_call.1} parent=1 // pred_region
      %713 = dma.done [#allocation4], 16
    $region37: #{tpu_custom_call.1} parent=1 // pred_fallthru
      _
    %714 = vsyncpa [#allocation4], 1

</llo_original>
